<compile_context>
chip_gen: v7x
topology: tpu7x:2x2x1
jax: 0.10.0
libtpu: 0.0.40
codegen_flags: <defaults>
</compile_context>

<pallas_src>
import functools

import jax
import jax.numpy as jnp
from jax import lax
from jax.experimental import pallas as pl
from jax.experimental.pallas import tpu as pltpu


def _round_up(x, m):
    return ((x + m - 1) // m) * m


def _device_kind():
    try:
        return jax.devices()[0].device_kind.lower()
    except Exception:  # pragma: no cover - CPU / interpret fallback
        return ""


def _controlnet_kernel(x_ref, w1_ref, b1_ref, w2_ref, b2_ref, w3_ref, b3_ref,
                       o_ref, *, sub_b, n_sub):
    # Weights are resident in VMEM for the whole grid step; read once.
    w1 = w1_ref[...]          # (n_hidden, n_in)   torch layout
    w2 = w2_ref[...]          # (n_hidden, n_hidden)
    w3 = w3_ref[...]          # (n_out, n_hidden)
    n_hidden = w1.shape[0]
    n_out = w3.shape[0]
    # Hoist bias broadcasts out of the sub-tile loop (JAX does not CSE
    # broadcast_in_dim).  Biases broadcast across the lane (batch) axis.
    b1 = jnp.broadcast_to(b1_ref[...], (n_hidden, sub_b))
    b2 = jnp.broadcast_to(b2_ref[...], (n_hidden, sub_b))
    b3 = jnp.broadcast_to(b3_ref[...], (n_out, sub_b))

    def body(s, carry):
        c0 = pl.multiple_of(s * sub_b, sub_b)
        xt = x_ref[:, pl.ds(c0, sub_b)]                     # (n_in, sub_b) lane-dense
        h1 = jnp.maximum(
            jnp.dot(w1, xt, preferred_element_type=jnp.float32) + b1, 0.0)
        h2 = jnp.maximum(
            jnp.dot(w2, h1, preferred_element_type=jnp.float32) + b2, 0.0)
        out = jnp.dot(w3, h2, preferred_element_type=jnp.float32) + b3
        # Lane-dense, unmasked store straight into the (n_out, block_b) block.
        o_ref[:, pl.ds(c0, sub_b)] = out.astype(o_ref.dtype)
        return carry

    lax.fori_loop(0, n_sub, body, None, unroll=min(n_sub, 4))


@functools.partial(jax.jit, static_argnames=("block_b",))
def controlnet_forward(x, params, block_b=None):
    """x: (B, n_input) f32.  params: torch-layout weights w{1,2,3}: (out, in), b{1,2,3}: (out,)."""
    B, n_in = x.shape
    n_hidden = params["w1"].shape[0]
    n_out = params["w3"].shape[0]

    # ---- static tiling decisions --------------------------------------------
    kind = _device_kind()
    is_v5 = "v5" in kind
    is_v7 = "v7" in kind
    # MXU N-dim sub-tile: 256 fills the 256-wide v6e/v7x MXU, 128 on v5e.
    sub_b = 128 if is_v5 else 256

    b_pad = _round_up(B, sub_b)            # lane padding (cheap zero rows)
    max_block = 16384                      # x tile = 8*block_b*4 B (sublane-padded) — tiny
    if block_b is None:
        if is_v7 and b_pad >= 2 * sub_b:
            # Megacore: >= 2 parallel grid steps so both TensorCores get work.
            block_b = _round_up(pl.cdiv(b_pad, 2), sub_b)
        else:
            # Single-TC chips: whole padded batch in one grid step when it fits
            # (per-step overhead ~0.35us is a measurable fraction here).
            block_b = min(b_pad, max_block)
    block_b = min(_round_up(int(block_b), sub_b), max_block)
    B_pad = _round_up(b_pad, block_b)
    grid = (B_pad // block_b,)
    n_sub = block_b // sub_b

    # ---- transposed (lane = batch) dataflow ---------------------------------
    xt = x.T                                               # (n_in, B), tiny XLA transpose
    if B_pad != B:
        xt = jnp.pad(xt, ((0, 0), (0, B_pad - B)))

    w1, b1 = params["w1"], params["b1"].reshape(n_hidden, 1)
    w2, b2 = params["w2"], params["b2"].reshape(n_hidden, 1)
    w3, b3 = params["w3"], params["b3"].reshape(n_out, 1)

    in_specs = [
        pl.BlockSpec((n_in, block_b), lambda i: (0, i)),       # xT  (batch-tiled on lanes)
        pl.BlockSpec((n_hidden, n_in), lambda i: (0, 0)),      # w1  (resident)
        pl.BlockSpec((n_hidden, 1), lambda i: (0, 0)),         # b1
        pl.BlockSpec((n_hidden, n_hidden), lambda i: (0, 0)),  # w2
        pl.BlockSpec((n_hidden, 1), lambda i: (0, 0)),         # b2
        pl.BlockSpec((n_out, n_hidden), lambda i: (0, 0)),     # w3
        pl.BlockSpec((n_out, 1), lambda i: (0, 0)),            # b3
    ]
    # Single lane-dense output slab (n_out, B_pad); one contiguous writeback per step.
    out_specs = pl.BlockSpec((n_out, block_b), lambda i: (0, i))

    flops = 2 * B_pad * (n_in * n_hidden + n_hidden * n_hidden + n_hidden * n_out)
    bytes_accessed = 4 * (B_pad * n_in + B_pad * n_out + n_in * n_hidden
                          + n_hidden * n_hidden + n_hidden * n_out
                          + 2 * n_hidden + n_out)

    out_t = pl.pallas_call(
        functools.partial(_controlnet_kernel, sub_b=sub_b, n_sub=n_sub),
        out_shape=jax.ShapeDtypeStruct((n_out, B_pad), jnp.float32),
        grid_spec=pltpu.PrefetchScalarGridSpec(
            num_scalar_prefetch=0,
            grid=grid,
            in_specs=in_specs,
            out_specs=out_specs,
        ),
        compiler_params=pltpu.CompilerParams(
            dimension_semantics=("parallel",)),
        cost_estimate=pl.CostEstimate(
            flops=flops, transcendentals=0, bytes_accessed=bytes_accessed),
    )(xt, w1, b1, w2, b2, w3, b3)

    # One tiny (n_out, B) transpose in XLA; padded columns are sliced off.
    return out_t[:, :B].T


def init_params(key, n_input, n_hidden, n_output):
    """Deterministic init mimicking torch.nn.Linear (uniform +-1/sqrt(fan_in)).

    Weights kept in torch (out_features, in_features) layout."""
    ks = jax.random.split(key, 6)

    def lin(kw, kb, fan_in, fan_out):
        bound = 1.0 / jnp.sqrt(jnp.float32(fan_in))
        w = jax.random.uniform(kw, (fan_out, fan_in), jnp.float32, -bound, bound)
        b = jax.random.uniform(kb, (fan_out,), jnp.float32, -bound, bound)
        return w, b

    w1, b1 = lin(ks[0], ks[1], n_input, n_hidden)
    w2, b2 = lin(ks[2], ks[3], n_hidden, n_hidden)
    w3, b3 = lin(ks[4], ks[5], n_hidden, n_output)
    return dict(w1=w1, b1=b1, w2=w2, b2=b2, w3=w3, b3=b3)


def reference_forward(x, p):
    h1 = jnp.maximum(x @ p["w1"].T + p["b1"], 0.0)
    h2 = jnp.maximum(h1 @ p["w2"].T + p["b2"], 0.0)
    return h2 @ p["w3"].T + p["b3"]


if __name__ == "__main__":
    n_input, n_hidden, n_output = 4, 32, 2

    key = jax.random.PRNGKey(0)
    kx, kp, kx2 = jax.random.split(key, 3)
    params = init_params(kp, n_input, n_hidden, n_output)

    # Main check: batch large enough for the auto block_b / megacore split path.
    batch = 1024
    x = jax.random.normal(kx, (batch, n_input), jnp.float32)
    out = jax.block_until_ready(controlnet_forward(x, params))
    ref = reference_forward(x, params)
    assert out.shape == (batch, n_output)
    assert jnp.allclose(out, ref, atol=1e-4, rtol=1e-4), "mismatch vs reference"

    # Ragged-batch check (exercises the zero-padding path, single grid step).
    batch2 = 100
    x2 = jax.random.normal(kx2, (batch2, n_input), jnp.float32)
    out2 = jax.block_until_ready(controlnet_forward(x2, params))
    ref2 = reference_forward(x2, params)
    assert out2.shape == (batch2, n_output)
    assert jnp.allclose(out2, ref2, atol=1e-4, rtol=1e-4), "mismatch vs reference (ragged)"

    print("KERNEL_OK")
</pallas_src>

<mosaic_0001>
module attributes {stable_mosaic.version = 11 : i64} {
  func.func @_controlnet_kernel(%arg0: i32, %arg1: memref<4x1024xf32, #tpu.memory_space<vmem>>, %arg2: memref<32x4xf32, #tpu.memory_space<vmem>>, %arg3: memref<32x1xf32, #tpu.memory_space<vmem>>, %arg4: memref<32x32xf32, #tpu.memory_space<vmem>>, %arg5: memref<32x1xf32, #tpu.memory_space<vmem>>, %arg6: memref<2x32xf32, #tpu.memory_space<vmem>>, %arg7: memref<2x1xf32, #tpu.memory_space<vmem>>, %arg8: memref<2x1024xf32, #tpu.memory_space<vmem>>) attributes {dimension_semantics = [#tpu.dimension_semantics<parallel>], iteration_bounds = array<i64: 1>, scalar_prefetch = 0 : i64, scratch_operands = 0 : i64, tpu.core_type = #tpu.core_type<tc>, window_params = [{transform_indices = @transform_0, window_bounds = array<i64: 4, 1024>}, {pipeline_mode = #tpu.pipeline_mode<synchronous>, transform_indices = @transform_1, window_bounds = array<i64: 32, 4>}, {pipeline_mode = #tpu.pipeline_mode<synchronous>, transform_indices = @transform_2, window_bounds = array<i64: 32, 1>}, {pipeline_mode = #tpu.pipeline_mode<synchronous>, transform_indices = @transform_3, window_bounds = array<i64: 32, 32>}, {pipeline_mode = #tpu.pipeline_mode<synchronous>, transform_indices = @transform_4, window_bounds = array<i64: 32, 1>}, {pipeline_mode = #tpu.pipeline_mode<synchronous>, transform_indices = @transform_5, window_bounds = array<i64: 2, 32>}, {pipeline_mode = #tpu.pipeline_mode<synchronous>, transform_indices = @transform_6, window_bounds = array<i64: 2, 1>}, {transform_indices = @transform_7, window_bounds = array<i64: 2, 1024>}]} {
    %c0 = arith.constant 0 : index
    %c0_0 = arith.constant 0 : index
    %0 = vector.load %arg2[%c0, %c0_0] : memref<32x4xf32, #tpu.memory_space<vmem>>, vector<32x4xf32>
    %c0_1 = arith.constant 0 : index
    %c0_2 = arith.constant 0 : index
    %1 = vector.load %arg4[%c0_1, %c0_2] : memref<32x32xf32, #tpu.memory_space<vmem>>, vector<32x32xf32>
    %c0_3 = arith.constant 0 : index
    %c0_4 = arith.constant 0 : index
    %2 = vector.load %arg6[%c0_3, %c0_4] : memref<2x32xf32, #tpu.memory_space<vmem>>, vector<2x32xf32>
    %c0_5 = arith.constant 0 : index
    %c0_6 = arith.constant 0 : index
    %3 = vector.load %arg3[%c0_5, %c0_6] : memref<32x1xf32, #tpu.memory_space<vmem>>, vector<32x1xf32>
    %4 = vector.shape_cast %3 : vector<32x1xf32> to vector<32x1xf32>
    %5 = vector.broadcast %4 : vector<32x1xf32> to vector<32x256xf32>
    %c0_7 = arith.constant 0 : index
    %c0_8 = arith.constant 0 : index
    %6 = vector.load %arg5[%c0_7, %c0_8] : memref<32x1xf32, #tpu.memory_space<vmem>>, vector<32x1xf32>
    %7 = vector.shape_cast %6 : vector<32x1xf32> to vector<32x1xf32>
    %8 = vector.broadcast %7 : vector<32x1xf32> to vector<32x256xf32>
    %c0_9 = arith.constant 0 : index
    %c0_10 = arith.constant 0 : index
    %9 = vector.load %arg7[%c0_9, %c0_10] : memref<2x1xf32, #tpu.memory_space<vmem>>, vector<2x1xf32>
    %10 = vector.shape_cast %9 : vector<2x1xf32> to vector<2x1xf32>
    %11 = vector.broadcast %10 : vector<2x1xf32> to vector<2x256xf32>
    %c0_i32 = arith.constant 0 : i32
    %c256_i32 = arith.constant 256 : i32
    %12 = arith.muli %c0_i32, %c256_i32 : i32
    %13 = tpu.assume_multiple %12, 256 : i32
    %c0_11 = arith.constant 0 : index
    %14 = arith.index_cast %13 : i32 to index
    %15 = vector.load %arg1[%c0_11, %14] : memref<4x1024xf32, #tpu.memory_space<vmem>>, vector<4x256xf32>
    %cst = arith.constant dense<0.000000e+00> : vector<32x256xf32>
    %16 = tpu.matmul %0, %15, %cst {dimension_numbers = #tpu.dot_dimension_numbers<[1], [0], [0], [1], [0, 0, 1, 1], [], []>} : vector<32x4xf32>, vector<4x256xf32>, vector<32x256xf32> -> vector<32x256xf32>
    %17 = arith.addf %16, %5 : vector<32x256xf32>
    %cst_12 = arith.constant 0.000000e+00 : f32
    %18 = vector.broadcast %cst_12 : f32 to vector<32x256xf32>
    %19 = arith.maximumf %17, %18 : vector<32x256xf32>
    %cst_13 = arith.constant dense<0.000000e+00> : vector<32x256xf32>
    %20 = tpu.matmul %1, %19, %cst_13 {dimension_numbers = #tpu.dot_dimension_numbers<[1], [0], [0], [1], [0, 0, 1, 1], [], []>} : vector<32x32xf32>, vector<32x256xf32>, vector<32x256xf32> -> vector<32x256xf32>
    %21 = arith.addf %20, %8 : vector<32x256xf32>
    %cst_14 = arith.constant 0.000000e+00 : f32
    %22 = vector.broadcast %cst_14 : f32 to vector<32x256xf32>
    %23 = arith.maximumf %21, %22 : vector<32x256xf32>
    %cst_15 = arith.constant dense<0.000000e+00> : vector<2x256xf32>
    %24 = tpu.matmul %2, %23, %cst_15 {dimension_numbers = #tpu.dot_dimension_numbers<[1], [0], [0], [1], [0, 0, 1, 1], [], []>} : vector<2x32xf32>, vector<32x256xf32>, vector<2x256xf32> -> vector<2x256xf32>
    %25 = arith.addf %24, %11 : vector<2x256xf32>
    %c0_16 = arith.constant 0 : index
    %26 = arith.index_cast %13 : i32 to index
    %27 = vector.load %arg8[%c0_16, %26] : memref<2x1024xf32, #tpu.memory_space<vmem>>, vector<2x256xf32>
    tpu.vector_store %arg8[%c0_16, %26], %25 {strides = array<i32>} : memref<2x1024xf32, #tpu.memory_space<vmem>>, vector<2x256xf32>,
    %c1_i32 = arith.constant 1 : i32
    %c256_i32_17 = arith.constant 256 : i32
    %28 = arith.muli %c1_i32, %c256_i32_17 : i32
    %29 = tpu.assume_multiple %28, 256 : i32
    %c0_18 = arith.constant 0 : index
    %30 = arith.index_cast %29 : i32 to index
    %31 = vector.load %arg1[%c0_18, %30] : memref<4x1024xf32, #tpu.memory_space<vmem>>, vector<4x256xf32>
    %cst_19 = arith.constant dense<0.000000e+00> : vector<32x256xf32>
    %32 = tpu.matmul %0, %31, %cst_19 {dimension_numbers = #tpu.dot_dimension_numbers<[1], [0], [0], [1], [0, 0, 1, 1], [], []>} : vector<32x4xf32>, vector<4x256xf32>, vector<32x256xf32> -> vector<32x256xf32>
    %33 = arith.addf %32, %5 : vector<32x256xf32>
    %cst_20 = arith.constant 0.000000e+00 : f32
    %34 = vector.broadcast %cst_20 : f32 to vector<32x256xf32>
    %35 = arith.maximumf %33, %34 : vector<32x256xf32>
    %cst_21 = arith.constant dense<0.000000e+00> : vector<32x256xf32>
    %36 = tpu.matmul %1, %35, %cst_21 {dimension_numbers = #tpu.dot_dimension_numbers<[1], [0], [0], [1], [0, 0, 1, 1], [], []>} : vector<32x32xf32>, vector<32x256xf32>, vector<32x256xf32> -> vector<32x256xf32>
    %37 = arith.addf %36, %8 : vector<32x256xf32>
    %cst_22 = arith.constant 0.000000e+00 : f32
    %38 = vector.broadcast %cst_22 : f32 to vector<32x256xf32>
    %39 = arith.maximumf %37, %38 : vector<32x256xf32>
    %cst_23 = arith.constant dense<0.000000e+00> : vector<2x256xf32>
    %40 = tpu.matmul %2, %39, %cst_23 {dimension_numbers = #tpu.dot_dimension_numbers<[1], [0], [0], [1], [0, 0, 1, 1], [], []>} : vector<2x32xf32>, vector<32x256xf32>, vector<2x256xf32> -> vector<2x256xf32>
    %41 = arith.addf %40, %11 : vector<2x256xf32>
    %c0_24 = arith.constant 0 : index
    %42 = arith.index_cast %29 : i32 to index
    %43 = vector.load %arg8[%c0_24, %42] : memref<2x1024xf32, #tpu.memory_space<vmem>>, vector<2x256xf32>
    tpu.vector_store %arg8[%c0_24, %42], %41 {strides = array<i32>} : memref<2x1024xf32, #tpu.memory_space<vmem>>, vector<2x256xf32>,
    %c2_i32 = arith.constant 2 : i32
    %c256_i32_25 = arith.constant 256 : i32
    %44 = arith.muli %c2_i32, %c256_i32_25 : i32
    %45 = tpu.assume_multiple %44, 256 : i32
    %c0_26 = arith.constant 0 : index
    %46 = arith.index_cast %45 : i32 to index
    %47 = vector.load %arg1[%c0_26, %46] : memref<4x1024xf32, #tpu.memory_space<vmem>>, vector<4x256xf32>
    %cst_27 = arith.constant dense<0.000000e+00> : vector<32x256xf32>
    %48 = tpu.matmul %0, %47, %cst_27 {dimension_numbers = #tpu.dot_dimension_numbers<[1], [0], [0], [1], [0, 0, 1, 1], [], []>} : vector<32x4xf32>, vector<4x256xf32>, vector<32x256xf32> -> vector<32x256xf32>
    %49 = arith.addf %48, %5 : vector<32x256xf32>
    %cst_28 = arith.constant 0.000000e+00 : f32
    %50 = vector.broadcast %cst_28 : f32 to vector<32x256xf32>
    %51 = arith.maximumf %49, %50 : vector<32x256xf32>
    %cst_29 = arith.constant dense<0.000000e+00> : vector<32x256xf32>
    %52 = tpu.matmul %1, %51, %cst_29 {dimension_numbers = #tpu.dot_dimension_numbers<[1], [0], [0], [1], [0, 0, 1, 1], [], []>} : vector<32x32xf32>, vector<32x256xf32>, vector<32x256xf32> -> vector<32x256xf32>
    %53 = arith.addf %52, %8 : vector<32x256xf32>
    %cst_30 = arith.constant 0.000000e+00 : f32
    %54 = vector.broadcast %cst_30 : f32 to vector<32x256xf32>
    %55 = arith.maximumf %53, %54 : vector<32x256xf32>
    %cst_31 = arith.constant dense<0.000000e+00> : vector<2x256xf32>
    %56 = tpu.matmul %2, %55, %cst_31 {dimension_numbers = #tpu.dot_dimension_numbers<[1], [0], [0], [1], [0, 0, 1, 1], [], []>} : vector<2x32xf32>, vector<32x256xf32>, vector<2x256xf32> -> vector<2x256xf32>
    %57 = arith.addf %56, %11 : vector<2x256xf32>
    %c0_32 = arith.constant 0 : index
    %58 = arith.index_cast %45 : i32 to index
    %59 = vector.load %arg8[%c0_32, %58] : memref<2x1024xf32, #tpu.memory_space<vmem>>, vector<2x256xf32>
    tpu.vector_store %arg8[%c0_32, %58], %57 {strides = array<i32>} : memref<2x1024xf32, #tpu.memory_space<vmem>>, vector<2x256xf32>,
    %c3_i32 = arith.constant 3 : i32
    %c256_i32_33 = arith.constant 256 : i32
    %60 = arith.muli %c3_i32, %c256_i32_33 : i32
    %61 = tpu.assume_multiple %60, 256 : i32
    %c0_34 = arith.constant 0 : index
    %62 = arith.index_cast %61 : i32 to index
    %63 = vector.load %arg1[%c0_34, %62] : memref<4x1024xf32, #tpu.memory_space<vmem>>, vector<4x256xf32>
    %cst_35 = arith.constant dense<0.000000e+00> : vector<32x256xf32>
    %64 = tpu.matmul %0, %63, %cst_35 {dimension_numbers = #tpu.dot_dimension_numbers<[1], [0], [0], [1], [0, 0, 1, 1], [], []>} : vector<32x4xf32>, vector<4x256xf32>, vector<32x256xf32> -> vector<32x256xf32>
    %65 = arith.addf %64, %5 : vector<32x256xf32>
    %cst_36 = arith.constant 0.000000e+00 : f32
    %66 = vector.broadcast %cst_36 : f32 to vector<32x256xf32>
    %67 = arith.maximumf %65, %66 : vector<32x256xf32>
    %cst_37 = arith.constant dense<0.000000e+00> : vector<32x256xf32>
    %68 = tpu.matmul %1, %67, %cst_37 {dimension_numbers = #tpu.dot_dimension_numbers<[1], [0], [0], [1], [0, 0, 1, 1], [], []>} : vector<32x32xf32>, vector<32x256xf32>, vector<32x256xf32> -> vector<32x256xf32>
    %69 = arith.addf %68, %8 : vector<32x256xf32>
    %cst_38 = arith.constant 0.000000e+00 : f32
    %70 = vector.broadcast %cst_38 : f32 to vector<32x256xf32>
    %71 = arith.maximumf %69, %70 : vector<32x256xf32>
    %cst_39 = arith.constant dense<0.000000e+00> : vector<2x256xf32>
    %72 = tpu.matmul %2, %71, %cst_39 {dimension_numbers = #tpu.dot_dimension_numbers<[1], [0], [0], [1], [0, 0, 1, 1], [], []>} : vector<2x32xf32>, vector<32x256xf32>, vector<2x256xf32> -> vector<2x256xf32>
    %73 = arith.addf %72, %11 : vector<2x256xf32>
    %c0_40 = arith.constant 0 : index
    %74 = arith.index_cast %61 : i32 to index
    %75 = vector.load %arg8[%c0_40, %74] : memref<2x1024xf32, #tpu.memory_space<vmem>>, vector<2x256xf32>
    tpu.vector_store %arg8[%c0_40, %74], %73 {strides = array<i32>} : memref<2x1024xf32, #tpu.memory_space<vmem>>, vector<2x256xf32>,
    %c4_i32 = arith.constant 4 : i32
    return
  }
  func.func @transform_0(%arg0: i32) -> (i32, i32) {
    %c0_i32 = arith.constant 0 : i32
    %c0_i32_0 = arith.constant 0 : i32
    return %c0_i32, %arg0 : i32, i32
  }
  func.func @transform_1(%arg0: i32) -> (i32, i32) {
    %c0_i32 = arith.constant 0 : i32
    %c0_i32_0 = arith.constant 0 : i32
    %c0_i32_1 = arith.constant 0 : i32
    return %c0_i32, %c0_i32_0 : i32, i32
  }
  func.func @transform_2(%arg0: i32) -> (i32, i32) {
    %c0_i32 = arith.constant 0 : i32
    %c0_i32_0 = arith.constant 0 : i32
    %c0_i32_1 = arith.constant 0 : i32
    return %c0_i32, %c0_i32_0 : i32, i32
  }
  func.func @transform_3(%arg0: i32) -> (i32, i32) {
    %c0_i32 = arith.constant 0 : i32
    %c0_i32_0 = arith.constant 0 : i32
    %c0_i32_1 = arith.constant 0 : i32
    return %c0_i32, %c0_i32_0 : i32, i32
  }
  func.func @transform_4(%arg0: i32) -> (i32, i32) {
    %c0_i32 = arith.constant 0 : i32
    %c0_i32_0 = arith.constant 0 : i32
    %c0_i32_1 = arith.constant 0 : i32
    return %c0_i32, %c0_i32_0 : i32, i32
  }
  func.func @transform_5(%arg0: i32) -> (i32, i32) {
    %c0_i32 = arith.constant 0 : i32
    %c0_i32_0 = arith.constant 0 : i32
    %c0_i32_1 = arith.constant 0 : i32
    return %c0_i32, %c0_i32_0 : i32, i32
  }
  func.func @transform_6(%arg0: i32) -> (i32, i32) {
    %c0_i32 = arith.constant 0 : i32
    %c0_i32_0 = arith.constant 0 : i32
    %c0_i32_1 = arith.constant 0 : i32
    return %c0_i32, %c0_i32_0 : i32, i32
  }
  func.func @transform_7(%arg0: i32) -> (i32, i32) {
    %c0_i32 = arith.constant 0 : i32
    %c0_i32_0 = arith.constant 0 : i32
    return %c0_i32, %arg0 : i32, i32
  }
}

</mosaic_0001>

<llo_original>
// kernel: controlnet_forward.1
$region0: #{controlnet_forward.1}
  #allocation0 [shape = 'u32[]', space=smem, size = 0x4, offset = 0x4, fixed_abs, tag = 'smem constant byte address 0x4 - core index']
  #allocation1 [shape = 'u32[144,128]{1,0:T(1,128)}', space=vmem, size = 0x12000, scoped, tag = 'internal scratch']
  %s0 = inlined_call_operand.vmem [shape: f32[4,1024], index: 0, kind: input, shape index: {}]
  %s1 = inlined_call_operand.vmem [shape: f32[32,4], index: 1, kind: input, shape index: {}]
  %s2 = inlined_call_operand.vmem [shape: f32[32,1], index: 2, kind: input, shape index: {}]
  %s3 = inlined_call_operand.vmem [shape: f32[32,32], index: 3, kind: input, shape index: {}]
  %s4 = inlined_call_operand.vmem [shape: f32[32,1], index: 4, kind: input, shape index: {}]
  %s5 = inlined_call_operand.vmem [shape: f32[2,32], index: 5, kind: input, shape index: {}]
  %s6 = inlined_call_operand.vmem [shape: f32[2,1], index: 6, kind: input, shape index: {}]
  %s7 = inlined_call_operand.hbm [shape: f32[2,1024], index: 7, kind: output, shape index: {}]
  %s8 = sld [smem:[#allocation0]]
  $region38: #{controlnet_forward.1} parent=0
    _
  %s10 = ssub.s32 1, %s8
  %s11 = scalar_select 0, %s10, %s8
  $region1: #{controlnet_forward.1} parent=0
    #allocation2 [shape = 'u8[8192]{0}', space=vmem, size = 0x2000, scoped, tag = 'output window, operand 0, single buffered']
    #allocation3 [shape = 's32[1]{0}', space=sflag, size = 0x4, scoped, tag = 'scoped memory for controlnet_forward.1']
    %12 = vsyncpa [#allocation3], 0
    // Predicated region
    $region2: #{controlnet_forward.1} parent=1 // pred_check
      _
    $region3: #{controlnet_forward.1} parent=1 // pred_check_branch
      %14 = sbr.rel (0) target = $region5
    $region4: #{controlnet_forward.1} parent=1 // pred_region
      _
    $region5: #{controlnet_forward.1} parent=1 // pred_fallthru
      _
    // Predicated region
    $region6: #{controlnet_forward.1} parent=1 // pred_check
      _
    $region7: #{controlnet_forward.1} parent=1 // pred_check_branch
      %16 = sbr.rel (0) target = $region9
    $region8: #{controlnet_forward.1} parent=1 // pred_region
      _
    $region9: #{controlnet_forward.1} parent=1 // pred_fallthru
      _
    // Predicated region
    $region10: #{controlnet_forward.1} parent=1 // pred_check
      _
    $region11: #{controlnet_forward.1} parent=1 // pred_check_branch
      %18 = sbr.rel (0) target = $region13
    $region12: #{controlnet_forward.1} parent=1 // pred_region
      _
    $region13: #{controlnet_forward.1} parent=1 // pred_fallthru
      _
    // Predicated region
    $region14: #{controlnet_forward.1} parent=1 // pred_check
      _
    $region15: #{controlnet_forward.1} parent=1 // pred_check_branch
      %20 = sbr.rel (0) target = $region17
    $region16: #{controlnet_forward.1} parent=1 // pred_region
      _
    $region17: #{controlnet_forward.1} parent=1 // pred_fallthru
      _
    // Predicated region
    $region18: #{controlnet_forward.1} parent=1 // pred_check
      _
    $region19: #{controlnet_forward.1} parent=1 // pred_check_branch
      %22 = sbr.rel (0) target = $region21
    $region20: #{controlnet_forward.1} parent=1 // pred_region
      _
    $region21: #{controlnet_forward.1} parent=1 // pred_fallthru
      _
    // Predicated region
    $region22: #{controlnet_forward.1} parent=1 // pred_check
      _
    $region23: #{controlnet_forward.1} parent=1 // pred_check_branch
      %24 = sbr.rel (0) target = $region25
    $region24: #{controlnet_forward.1} parent=1 // pred_region
      _
    $region25: #{controlnet_forward.1} parent=1 // pred_fallthru
      _
    // Predicated region
    $region26: #{controlnet_forward.1} parent=1 // pred_check
      _
    $region27: #{controlnet_forward.1} parent=1 // pred_check_branch
      %26 = sbr.rel (0) target = $region29
    $region28: #{controlnet_forward.1} parent=1 // pred_region
      _
    $region29: #{controlnet_forward.1} parent=1 // pred_fallthru
      _
    %v27 = vld [vmem:[%s1] sm:$0xff]
    %v28 = vld [vmem:[%s1 + $0x8] sm:$0xff]
    %v29 = vld [vmem:[%s1 + $0x10] sm:$0xff]
    %v30 = vld [vmem:[%s1 + $0x18] sm:$0xff]
    %v31 = vld [vmem:[%s3] sm:$0xff]
    %v32 = vld [vmem:[%s3 + $0x8] sm:$0xff]
    %v33 = vld [vmem:[%s3 + $0x10] sm:$0xff]
    %v34 = vld [vmem:[%s3 + $0x18] sm:$0xff]
    %v35 = vld [vmem:[%s5] sm:$0x3]
    %v36 = vld [vmem:[%s2] sm:$0xff]
    %v37 = vld [vmem:[%s2 + $0x8] sm:$0xff]
    %v38 = vld [vmem:[%s2 + $0x10] sm:$0xff]
    %v39 = vld [vmem:[%s2 + $0x18] sm:$0xff]
    %41 = vset.pattern.permute.xlu0 0
    %42 = vperm.xlu0 %41, %v36
    %v43 = vpop.permute.xlu0 %42
    %46 = vset.pattern.permute.xlu0 0
    %47 = vperm.xlu0 %46, %v37
    %v48 = vpop.permute.xlu0 %47
    %51 = vset.pattern.permute.xlu0 0
    %52 = vperm.xlu0 %51, %v38
    %v53 = vpop.permute.xlu0 %52
    %56 = vset.pattern.permute.xlu0 0
    %57 = vperm.xlu0 %56, %v39
    %v58 = vpop.permute.xlu0 %57
    %v60 = vld [vmem:[%s4] sm:$0xff]
    %v61 = vld [vmem:[%s4 + $0x8] sm:$0xff]
    %v62 = vld [vmem:[%s4 + $0x10] sm:$0xff]
    %v63 = vld [vmem:[%s4 + $0x18] sm:$0xff]
    %65 = vset.pattern.permute.xlu0 0
    %66 = vperm.xlu0 %65, %v60
    %v67 = vpop.permute.xlu0 %66
    %70 = vset.pattern.permute.xlu0 0
    %71 = vperm.xlu0 %70, %v61
    %v72 = vpop.permute.xlu0 %71
    %75 = vset.pattern.permute.xlu0 0
    %76 = vperm.xlu0 %75, %v62
    %v77 = vpop.permute.xlu0 %76
    %80 = vset.pattern.permute.xlu0 0
    %81 = vperm.xlu0 %80, %v63
    %v82 = vpop.permute.xlu0 %81
    %v84 = vld [vmem:[%s6] sm:$0x3]
    %86 = vset.pattern.permute.xlu0 0
    %87 = vperm.xlu0 %86, %v84
    %v88 = vpop.permute.xlu0 %87
    %v90 = vld [vmem:[%s0] sm:$0xff]
    %v92 = vcombine.high %v90, %v90
    %vm93 = vcmask 31744
    %v95 = vsel %vm93, %v27, 0
    %v98 = vsel %vm93, %v28, 0
    %v101 = vsel %vm93, %v29, 0
    %v104 = vsel %vm93, %v30, 0
    %vm106 = vcmask 1043456
    %v107 = vsel %vm106, %v90, 0
    %v109 = vsel %vm106, %v92, 0
    %111 = vmatprep.subr.mxu0 %v109
    %112 = vmatpush1.msra.mxu0 %v107
    %113 = vmatprep.subr.mxu0 0.0
    %114 = vmatpush1.msra.mxu0 0.0
    %115 = vmatprep.subr.mxu0 0.0
    %116 = vmatpush1.msra.mxu0 0.0
    %117 = vmatprep.subr.mxu0 0.0
    %118 = vmatpush1.msra.mxu0 0.0
    %119 = vmatprep.subr.mxu0 0.0
    %120 = vmatpush1.msra.mxu0 0.0
    %121 = vmatprep.subr.mxu0 0.0
    %122 = vmatpush1.msra.mxu0 0.0
    %123 = vmatprep.subr.mxu0 0.0
    %124 = vmatpush1.msra.mxu0 0.0
    %125 = vmatprep.subr.mxu0 0.0
    %126 = vmatpush1.msra.mxu0 0.0
    %127 = vmatprep.subr.mxu0 0.0
    %128 = vmatpush1.msra.mxu0 0.0
    %129 = vmatprep.subr.mxu0 0.0
    %130 = vmatpush1.msra.mxu0 0.0
    %131 = vmatprep.subr.mxu0 0.0
    %132 = vmatpush1.msra.mxu0 0.0
    %133 = vmatprep.subr.mxu0 0.0
    %134 = vmatpush1.msra.mxu0 0.0
    %135 = vmatprep.subr.mxu0 0.0
    %136 = vmatpush1.msra.mxu0 0.0
    %137 = vmatprep.subr.mxu0 0.0
    %138 = vmatpush1.msra.mxu0 0.0
    %139 = vmatprep.subr.mxu0 0.0
    %140 = vmatpush1.msra.mxu0 0.0
    %141 = vmatprep.subr.mxu0 0.0
    %142 = vmatpush1.msra.mxu0 0.0
    %143 = vmatprep.subr.mxu0 0.0
    %144 = vmatpush1.msra.mxu0 0.0
    %145 = vmatprep.subr.mxu0 0.0
    %146 = vmatpush1.msra.mxu0 0.0
    %147 = vmatprep.subr.mxu0 0.0
    %148 = vmatpush1.msra.mxu0 0.0
    %149 = vmatprep.subr.mxu0 0.0
    %150 = vmatpush1.msra.mxu0 0.0
    %151 = vmatprep.subr.mxu0 0.0
    %152 = vmatpush1.msra.mxu0 0.0
    %153 = vmatprep.subr.mxu0 0.0
    %154 = vmatpush1.msra.mxu0 0.0
    %155 = vmatprep.subr.mxu0 0.0
    %156 = vmatpush1.msra.mxu0 0.0
    %157 = vmatprep.subr.mxu0 0.0
    %158 = vmatpush1.msra.mxu0 0.0
    %159 = vmatprep.subr.mxu0 0.0
    %160 = vmatpush1.msra.mxu0 0.0
    %161 = vmatprep.subr.mxu0 0.0
    %162 = vmatpush1.msra.mxu0 0.0
    %163 = vmatprep.subr.mxu0 0.0
    %164 = vmatpush1.msra.mxu0 0.0
    %165 = vmatprep.subr.mxu0 0.0
    %166 = vmatpush1.msra.mxu0 0.0
    %167 = vmatprep.subr.mxu0 0.0
    %168 = vmatpush1.msra.mxu0 0.0
    %169 = vmatprep.subr.mxu0 0.0
    %170 = vmatpush1.msra.mxu0 0.0
    %171 = vmatprep.subr.mxu0 0.0
    %172 = vmatpush1.msra.mxu0 0.0
    %173 = vmatprep.subr.mxu0 0.0
    %174 = vmatpush1.msra.mxu0 0.0
    %175 = vmatprep.mubr.f32.mxu0 0.0
    %176 = vmatmul.mubr.f32.gmra.mrb[0].mxu0 %v95
    %v177 = vpop.f32.mrb[0].mxu0
    %v178 = vadd.f32 %v43, %v177
    %v179 = vpop.f32.mrb[0].mxu0
    %v180 = vadd.f32 %v43, %v179
    %181 = vmatprep.mubr.f32.mxu0 0.0
    %182 = vmatmul.mubr.f32.gmra.mrb[0].mxu0 %v98
    %v183 = vpop.f32.mrb[0].mxu0
    %v184 = vadd.f32 %v48, %v183
    %v185 = vpop.f32.mrb[0].mxu0
    %v186 = vadd.f32 %v48, %v185
    %187 = vmatprep.mubr.f32.mxu0 0.0
    %188 = vmatmul.mubr.f32.gmra.mrb[0].mxu0 %v101
    %v189 = vpop.f32.mrb[0].mxu0
    %v190 = vadd.f32 %v53, %v189
    %v191 = vpop.f32.mrb[0].mxu0
    %v192 = vadd.f32 %v53, %v191
    %193 = vmatprep.mubr.f32.mxu0 0.0
    %194 = vmatmul.mubr.f32.gmra.mrb[0].mxu0 %v104
    %v195 = vpop.f32.mrb[0].mxu0
    %v196 = vadd.f32 %v58, %v195
    %v197 = vpop.f32.mrb[0].mxu0
    %v198 = vadd.f32 %v58, %v197
    %199 = vdwg.mxu0
    %v200 = vmax.f32 %v178, 0.0
    %v201 = vmax.f32 %v180, 0.0
    %v202 = vmax.f32 %v184, 0.0
    %v203 = vmax.f32 %v186, 0.0
    %v204 = vmax.f32 %v190, 0.0
    %v205 = vmax.f32 %v192, 0.0
    %v206 = vmax.f32 %v196, 0.0
    %v207 = vmax.f32 %v198, 0.0
    %vm208 = vcmask 261120
    %v210 = vsel %vm208, %v31, 0
    %v213 = vsel %vm208, %v32, 0
    %v216 = vsel %vm208, %v33, 0
    %v219 = vsel %vm208, %v34, 0
    %221 = vmatprep.subr.mxu0 %v201
    %222 = vmatpush1.msra.mxu0 %v200
    %223 = vmatprep.subr.mxu0 %v203
    %224 = vmatpush1.msra.mxu0 %v202
    %225 = vmatprep.subr.mxu0 %v205
    %226 = vmatpush1.msra.mxu0 %v204
    %227 = vmatprep.subr.mxu0 %v207
    %228 = vmatpush1.msra.mxu0 %v206
    %229 = vmatprep.subr.mxu0 0.0
    %230 = vmatpush1.msra.mxu0 0.0
    %231 = vmatprep.subr.mxu0 0.0
    %232 = vmatpush1.msra.mxu0 0.0
    %233 = vmatprep.subr.mxu0 0.0
    %234 = vmatpush1.msra.mxu0 0.0
    %235 = vmatprep.subr.mxu0 0.0
    %236 = vmatpush1.msra.mxu0 0.0
    %237 = vmatprep.subr.mxu0 0.0
    %238 = vmatpush1.msra.mxu0 0.0
    %239 = vmatprep.subr.mxu0 0.0
    %240 = vmatpush1.msra.mxu0 0.0
    %241 = vmatprep.subr.mxu0 0.0
    %242 = vmatpush1.msra.mxu0 0.0
    %243 = vmatprep.subr.mxu0 0.0
    %244 = vmatpush1.msra.mxu0 0.0
    %245 = vmatprep.subr.mxu0 0.0
    %246 = vmatpush1.msra.mxu0 0.0
    %247 = vmatprep.subr.mxu0 0.0
    %248 = vmatpush1.msra.mxu0 0.0
    %249 = vmatprep.subr.mxu0 0.0
    %250 = vmatpush1.msra.mxu0 0.0
    %251 = vmatprep.subr.mxu0 0.0
    %252 = vmatpush1.msra.mxu0 0.0
    %253 = vmatprep.subr.mxu0 0.0
    %254 = vmatpush1.msra.mxu0 0.0
    %255 = vmatprep.subr.mxu0 0.0
    %256 = vmatpush1.msra.mxu0 0.0
    %257 = vmatprep.subr.mxu0 0.0
    %258 = vmatpush1.msra.mxu0 0.0
    %259 = vmatprep.subr.mxu0 0.0
    %260 = vmatpush1.msra.mxu0 0.0
    %261 = vmatprep.subr.mxu0 0.0
    %262 = vmatpush1.msra.mxu0 0.0
    %263 = vmatprep.subr.mxu0 0.0
    %264 = vmatpush1.msra.mxu0 0.0
    %265 = vmatprep.subr.mxu0 0.0
    %266 = vmatpush1.msra.mxu0 0.0
    %267 = vmatprep.subr.mxu0 0.0
    %268 = vmatpush1.msra.mxu0 0.0
    %269 = vmatprep.subr.mxu0 0.0
    %270 = vmatpush1.msra.mxu0 0.0
    %271 = vmatprep.subr.mxu0 0.0
    %272 = vmatpush1.msra.mxu0 0.0
    %273 = vmatprep.subr.mxu0 0.0
    %274 = vmatpush1.msra.mxu0 0.0
    %275 = vmatprep.subr.mxu0 0.0
    %276 = vmatpush1.msra.mxu0 0.0
    %277 = vmatprep.subr.mxu0 0.0
    %278 = vmatpush1.msra.mxu0 0.0
    %279 = vmatprep.subr.mxu0 0.0
    %280 = vmatpush1.msra.mxu0 0.0
    %281 = vmatprep.subr.mxu0 0.0
    %282 = vmatpush1.msra.mxu0 0.0
    %283 = vmatprep.subr.mxu0 0.0
    %284 = vmatpush1.msra.mxu0 0.0
    %285 = vmatprep.mubr.f32.mxu0 0.0
    %286 = vmatmul.mubr.f32.gmra.mrb[0].mxu0 %v210
    %v287 = vpop.f32.mrb[0].mxu0
    %v288 = vadd.f32 %v67, %v287
    %v289 = vpop.f32.mrb[0].mxu0
    %v290 = vadd.f32 %v67, %v289
    %291 = vmatprep.mubr.f32.mxu0 0.0
    %292 = vmatmul.mubr.f32.gmra.mrb[0].mxu0 %v213
    %v293 = vpop.f32.mrb[0].mxu0
    %v294 = vadd.f32 %v72, %v293
    %v295 = vpop.f32.mrb[0].mxu0
    %v296 = vadd.f32 %v72, %v295
    %297 = vmatprep.mubr.f32.mxu0 0.0
    %298 = vmatmul.mubr.f32.gmra.mrb[0].mxu0 %v216
    %v299 = vpop.f32.mrb[0].mxu0
    %v300 = vadd.f32 %v77, %v299
    %v301 = vpop.f32.mrb[0].mxu0
    %v302 = vadd.f32 %v77, %v301
    %303 = vmatprep.mubr.f32.mxu0 0.0
    %304 = vmatmul.mubr.f32.gmra.mrb[0].mxu0 %v219
    %v305 = vpop.f32.mrb[0].mxu0
    %v306 = vadd.f32 %v82, %v305
    %v307 = vpop.f32.mrb[0].mxu0
    %v308 = vadd.f32 %v82, %v307
    %309 = vdwg.mxu0
    %v310 = vmax.f32 %v288, 0.0
    %v311 = vmax.f32 %v290, 0.0
    %v312 = vmax.f32 %v294, 0.0
    %v313 = vmax.f32 %v296, 0.0
    %v314 = vmax.f32 %v300, 0.0
    %v315 = vmax.f32 %v302, 0.0
    %v316 = vmax.f32 %v306, 0.0
    %v317 = vmax.f32 %v308, 0.0
    %v319 = vsel %vm208, %v35, 0
    %321 = vmatprep.subr.mxu0 %v311
    %322 = vmatpush1.msra.mxu0 %v310
    %323 = vmatprep.subr.mxu0 %v313
    %324 = vmatpush1.msra.mxu0 %v312
    %325 = vmatprep.subr.mxu0 %v315
    %326 = vmatpush1.msra.mxu0 %v314
    %327 = vmatprep.subr.mxu0 %v317
    %328 = vmatpush1.msra.mxu0 %v316
    %329 = vmatprep.subr.mxu0 0.0
    %330 = vmatpush1.msra.mxu0 0.0
    %331 = vmatprep.subr.mxu0 0.0
    %332 = vmatpush1.msra.mxu0 0.0
    %333 = vmatprep.subr.mxu0 0.0
    %334 = vmatpush1.msra.mxu0 0.0
    %335 = vmatprep.subr.mxu0 0.0
    %336 = vmatpush1.msra.mxu0 0.0
    %337 = vmatprep.subr.mxu0 0.0
    %338 = vmatpush1.msra.mxu0 0.0
    %339 = vmatprep.subr.mxu0 0.0
    %340 = vmatpush1.msra.mxu0 0.0
    %341 = vmatprep.subr.mxu0 0.0
    %342 = vmatpush1.msra.mxu0 0.0
    %343 = vmatprep.subr.mxu0 0.0
    %344 = vmatpush1.msra.mxu0 0.0
    %345 = vmatprep.subr.mxu0 0.0
    %346 = vmatpush1.msra.mxu0 0.0
    %347 = vmatprep.subr.mxu0 0.0
    %348 = vmatpush1.msra.mxu0 0.0
    %349 = vmatprep.subr.mxu0 0.0
    %350 = vmatpush1.msra.mxu0 0.0
    %351 = vmatprep.subr.mxu0 0.0
    %352 = vmatpush1.msra.mxu0 0.0
    %353 = vmatprep.subr.mxu0 0.0
    %354 = vmatpush1.msra.mxu0 0.0
    %355 = vmatprep.subr.mxu0 0.0
    %356 = vmatpush1.msra.mxu0 0.0
    %357 = vmatprep.subr.mxu0 0.0
    %358 = vmatpush1.msra.mxu0 0.0
    %359 = vmatprep.subr.mxu0 0.0
    %360 = vmatpush1.msra.mxu0 0.0
    %361 = vmatprep.subr.mxu0 0.0
    %362 = vmatpush1.msra.mxu0 0.0
    %363 = vmatprep.subr.mxu0 0.0
    %364 = vmatpush1.msra.mxu0 0.0
    %365 = vmatprep.subr.mxu0 0.0
    %366 = vmatpush1.msra.mxu0 0.0
    %367 = vmatprep.subr.mxu0 0.0
    %368 = vmatpush1.msra.mxu0 0.0
    %369 = vmatprep.subr.mxu0 0.0
    %370 = vmatpush1.msra.mxu0 0.0
    %371 = vmatprep.subr.mxu0 0.0
    %372 = vmatpush1.msra.mxu0 0.0
    %373 = vmatprep.subr.mxu0 0.0
    %374 = vmatpush1.msra.mxu0 0.0
    %375 = vmatprep.subr.mxu0 0.0
    %376 = vmatpush1.msra.mxu0 0.0
    %377 = vmatprep.subr.mxu0 0.0
    %378 = vmatpush1.msra.mxu0 0.0
    %379 = vmatprep.subr.mxu0 0.0
    %380 = vmatpush1.msra.mxu0 0.0
    %381 = vmatprep.subr.mxu0 0.0
    %382 = vmatpush1.msra.mxu0 0.0
    %383 = vmatprep.subr.mxu0 0.0
    %384 = vmatpush1.msra.mxu0 0.0
    %385 = vmatprep.mubr.f32.mxu0 0.0
    %386 = vmatmul.mubr.f32.gmra.mrb[0].mxu0 %v319
    %v387 = vpop.f32.mrb[0].mxu0
    %v388 = vadd.f32 %v88, %v387
    %v389 = vpop.f32.mrb[0].mxu0
    %v390 = vadd.f32 %v88, %v389
    %391 = vdwg.mxu0
    %v394 = vcombine.low %v388, %v390
    %v396 = vunpack.c.l.s4 1983009808
    %v397 = vunpack.c.0.s8 %v396
    %v398 = vlaneseq
    %v399 = vshrl.u32 %v398, 7
    %v400 = vsub.s32 %v397, %v399
    %v401 = vrot.slane %v394, %v400
    %403 = vst [vmem:[#allocation2] sm:$0xf] %v401
    %s404 = scalar_lea.vmem %s0, 8
    %v405 = vld [vmem:[%s404] sm:$0xff]
    %v407 = vcombine.high %v405, %v405
    %v408 = vsel %vm106, %v405, 0
    %v410 = vsel %vm106, %v407, 0
    %412 = vmatprep.subr.mxu0 %v410
    %413 = vmatpush1.msra.mxu0 %v408
    %414 = vmatprep.subr.mxu0 0.0
    %415 = vmatpush1.msra.mxu0 0.0
    %416 = vmatprep.subr.mxu0 0.0
    %417 = vmatpush1.msra.mxu0 0.0
    %418 = vmatprep.subr.mxu0 0.0
    %419 = vmatpush1.msra.mxu0 0.0
    %420 = vmatprep.subr.mxu0 0.0
    %421 = vmatpush1.msra.mxu0 0.0
    %422 = vmatprep.subr.mxu0 0.0
    %423 = vmatpush1.msra.mxu0 0.0
    %424 = vmatprep.subr.mxu0 0.0
    %425 = vmatpush1.msra.mxu0 0.0
    %426 = vmatprep.subr.mxu0 0.0
    %427 = vmatpush1.msra.mxu0 0.0
    %428 = vmatprep.subr.mxu0 0.0
    %429 = vmatpush1.msra.mxu0 0.0
    %430 = vmatprep.subr.mxu0 0.0
    %431 = vmatpush1.msra.mxu0 0.0
    %432 = vmatprep.subr.mxu0 0.0
    %433 = vmatpush1.msra.mxu0 0.0
    %434 = vmatprep.subr.mxu0 0.0
    %435 = vmatpush1.msra.mxu0 0.0
    %436 = vmatprep.subr.mxu0 0.0
    %437 = vmatpush1.msra.mxu0 0.0
    %438 = vmatprep.subr.mxu0 0.0
    %439 = vmatpush1.msra.mxu0 0.0
    %440 = vmatprep.subr.mxu0 0.0
    %441 = vmatpush1.msra.mxu0 0.0
    %442 = vmatprep.subr.mxu0 0.0
    %443 = vmatpush1.msra.mxu0 0.0
    %444 = vmatprep.subr.mxu0 0.0
    %445 = vmatpush1.msra.mxu0 0.0
    %446 = vmatprep.subr.mxu0 0.0
    %447 = vmatpush1.msra.mxu0 0.0
    %448 = vmatprep.subr.mxu0 0.0
    %449 = vmatpush1.msra.mxu0 0.0
    %450 = vmatprep.subr.mxu0 0.0
    %451 = vmatpush1.msra.mxu0 0.0
    %452 = vmatprep.subr.mxu0 0.0
    %453 = vmatpush1.msra.mxu0 0.0
    %454 = vmatprep.subr.mxu0 0.0
    %455 = vmatpush1.msra.mxu0 0.0
    %456 = vmatprep.subr.mxu0 0.0
    %457 = vmatpush1.msra.mxu0 0.0
    %458 = vmatprep.subr.mxu0 0.0
    %459 = vmatpush1.msra.mxu0 0.0
    %460 = vmatprep.subr.mxu0 0.0
    %461 = vmatpush1.msra.mxu0 0.0
    %462 = vmatprep.subr.mxu0 0.0
    %463 = vmatpush1.msra.mxu0 0.0
    %464 = vmatprep.subr.mxu0 0.0
    %465 = vmatpush1.msra.mxu0 0.0
    %466 = vmatprep.subr.mxu0 0.0
    %467 = vmatpush1.msra.mxu0 0.0
    %468 = vmatprep.subr.mxu0 0.0
    %469 = vmatpush1.msra.mxu0 0.0
    %470 = vmatprep.subr.mxu0 0.0
    %471 = vmatpush1.msra.mxu0 0.0
    %472 = vmatprep.subr.mxu0 0.0
    %473 = vmatpush1.msra.mxu0 0.0
    %474 = vmatprep.subr.mxu0 0.0
    %475 = vmatpush1.msra.mxu0 0.0
    %476 = vmatprep.mubr.f32.mxu0 0.0
    %477 = vmatmul.mubr.f32.gmra.mrb[0].mxu0 %v95
    %v478 = vpop.f32.mrb[0].mxu0
    %v479 = vadd.f32 %v43, %v478
    %v480 = vpop.f32.mrb[0].mxu0
    %v481 = vadd.f32 %v43, %v480
    %482 = vmatprep.mubr.f32.mxu0 0.0
    %483 = vmatmul.mubr.f32.gmra.mrb[0].mxu0 %v98
    %v484 = vpop.f32.mrb[0].mxu0
    %v485 = vadd.f32 %v48, %v484
    %v486 = vpop.f32.mrb[0].mxu0
    %v487 = vadd.f32 %v48, %v486
    %488 = vmatprep.mubr.f32.mxu0 0.0
    %489 = vmatmul.mubr.f32.gmra.mrb[0].mxu0 %v101
    %v490 = vpop.f32.mrb[0].mxu0
    %v491 = vadd.f32 %v53, %v490
    %v492 = vpop.f32.mrb[0].mxu0
    %v493 = vadd.f32 %v53, %v492
    %494 = vmatprep.mubr.f32.mxu0 0.0
    %495 = vmatmul.mubr.f32.gmra.mrb[0].mxu0 %v104
    %v496 = vpop.f32.mrb[0].mxu0
    %v497 = vadd.f32 %v58, %v496
    %v498 = vpop.f32.mrb[0].mxu0
    %v499 = vadd.f32 %v58, %v498
    %500 = vdwg.mxu0
    %v501 = vmax.f32 %v479, 0.0
    %v502 = vmax.f32 %v481, 0.0
    %v503 = vmax.f32 %v485, 0.0
    %v504 = vmax.f32 %v487, 0.0
    %v505 = vmax.f32 %v491, 0.0
    %v506 = vmax.f32 %v493, 0.0
    %v507 = vmax.f32 %v497, 0.0
    %v508 = vmax.f32 %v499, 0.0
    %509 = vmatprep.subr.mxu0 %v502
    %510 = vmatpush1.msra.mxu0 %v501
    %511 = vmatprep.subr.mxu0 %v504
    %512 = vmatpush1.msra.mxu0 %v503
    %513 = vmatprep.subr.mxu0 %v506
    %514 = vmatpush1.msra.mxu0 %v505
    %515 = vmatprep.subr.mxu0 %v508
    %516 = vmatpush1.msra.mxu0 %v507
    %517 = vmatprep.subr.mxu0 0.0
    %518 = vmatpush1.msra.mxu0 0.0
    %519 = vmatprep.subr.mxu0 0.0
    %520 = vmatpush1.msra.mxu0 0.0
    %521 = vmatprep.subr.mxu0 0.0
    %522 = vmatpush1.msra.mxu0 0.0
    %523 = vmatprep.subr.mxu0 0.0
    %524 = vmatpush1.msra.mxu0 0.0
    %525 = vmatprep.subr.mxu0 0.0
    %526 = vmatpush1.msra.mxu0 0.0
    %527 = vmatprep.subr.mxu0 0.0
    %528 = vmatpush1.msra.mxu0 0.0
    %529 = vmatprep.subr.mxu0 0.0
    %530 = vmatpush1.msra.mxu0 0.0
    %531 = vmatprep.subr.mxu0 0.0
    %532 = vmatpush1.msra.mxu0 0.0
    %533 = vmatprep.subr.mxu0 0.0
    %534 = vmatpush1.msra.mxu0 0.0
    %535 = vmatprep.subr.mxu0 0.0
    %536 = vmatpush1.msra.mxu0 0.0
    %537 = vmatprep.subr.mxu0 0.0
    %538 = vmatpush1.msra.mxu0 0.0
    %539 = vmatprep.subr.mxu0 0.0
    %540 = vmatpush1.msra.mxu0 0.0
    %541 = vmatprep.subr.mxu0 0.0
    %542 = vmatpush1.msra.mxu0 0.0
    %543 = vmatprep.subr.mxu0 0.0
    %544 = vmatpush1.msra.mxu0 0.0
    %545 = vmatprep.subr.mxu0 0.0
    %546 = vmatpush1.msra.mxu0 0.0
    %547 = vmatprep.subr.mxu0 0.0
    %548 = vmatpush1.msra.mxu0 0.0
    %549 = vmatprep.subr.mxu0 0.0
    %550 = vmatpush1.msra.mxu0 0.0
    %551 = vmatprep.subr.mxu0 0.0
    %552 = vmatpush1.msra.mxu0 0.0
    %553 = vmatprep.subr.mxu0 0.0
    %554 = vmatpush1.msra.mxu0 0.0
    %555 = vmatprep.subr.mxu0 0.0
    %556 = vmatpush1.msra.mxu0 0.0
    %557 = vmatprep.subr.mxu0 0.0
    %558 = vmatpush1.msra.mxu0 0.0
    %559 = vmatprep.subr.mxu0 0.0
    %560 = vmatpush1.msra.mxu0 0.0
    %561 = vmatprep.subr.mxu0 0.0
    %562 = vmatpush1.msra.mxu0 0.0
    %563 = vmatprep.subr.mxu0 0.0
    %564 = vmatpush1.msra.mxu0 0.0
    %565 = vmatprep.subr.mxu0 0.0
    %566 = vmatpush1.msra.mxu0 0.0
    %567 = vmatprep.subr.mxu0 0.0
    %568 = vmatpush1.msra.mxu0 0.0
    %569 = vmatprep.subr.mxu0 0.0
    %570 = vmatpush1.msra.mxu0 0.0
    %571 = vmatprep.subr.mxu0 0.0
    %572 = vmatpush1.msra.mxu0 0.0
    %573 = vmatprep.mubr.f32.mxu0 0.0
    %574 = vmatmul.mubr.f32.gmra.mrb[0].mxu0 %v210
    %v575 = vpop.f32.mrb[0].mxu0
    %v576 = vadd.f32 %v67, %v575
    %v577 = vpop.f32.mrb[0].mxu0
    %v578 = vadd.f32 %v67, %v577
    %579 = vmatprep.mubr.f32.mxu0 0.0
    %580 = vmatmul.mubr.f32.gmra.mrb[0].mxu0 %v213
    %v581 = vpop.f32.mrb[0].mxu0
    %v582 = vadd.f32 %v72, %v581
    %v583 = vpop.f32.mrb[0].mxu0
    %v584 = vadd.f32 %v72, %v583
    %585 = vmatprep.mubr.f32.mxu0 0.0
    %586 = vmatmul.mubr.f32.gmra.mrb[0].mxu0 %v216
    %v587 = vpop.f32.mrb[0].mxu0
    %v588 = vadd.f32 %v77, %v587
    %v589 = vpop.f32.mrb[0].mxu0
    %v590 = vadd.f32 %v77, %v589
    %591 = vmatprep.mubr.f32.mxu0 0.0
    %592 = vmatmul.mubr.f32.gmra.mrb[0].mxu0 %v219
    %v593 = vpop.f32.mrb[0].mxu0
    %v594 = vadd.f32 %v82, %v593
    %v595 = vpop.f32.mrb[0].mxu0
    %v596 = vadd.f32 %v82, %v595
    %597 = vdwg.mxu0
    %v598 = vmax.f32 %v576, 0.0
    %v599 = vmax.f32 %v578, 0.0
    %v600 = vmax.f32 %v582, 0.0
    %v601 = vmax.f32 %v584, 0.0
    %v602 = vmax.f32 %v588, 0.0
    %v603 = vmax.f32 %v590, 0.0
    %v604 = vmax.f32 %v594, 0.0
    %v605 = vmax.f32 %v596, 0.0
    %606 = vmatprep.subr.mxu0 %v599
    %607 = vmatpush1.msra.mxu0 %v598
    %608 = vmatprep.subr.mxu0 %v601
    %609 = vmatpush1.msra.mxu0 %v600
    %610 = vmatprep.subr.mxu0 %v603
    %611 = vmatpush1.msra.mxu0 %v602
    %612 = vmatprep.subr.mxu0 %v605
    %613 = vmatpush1.msra.mxu0 %v604
    %614 = vmatprep.subr.mxu0 0.0
    %615 = vmatpush1.msra.mxu0 0.0
    %616 = vmatprep.subr.mxu0 0.0
    %617 = vmatpush1.msra.mxu0 0.0
    %618 = vmatprep.subr.mxu0 0.0
    %619 = vmatpush1.msra.mxu0 0.0
    %620 = vmatprep.subr.mxu0 0.0
    %621 = vmatpush1.msra.mxu0 0.0
    %622 = vmatprep.subr.mxu0 0.0
    %623 = vmatpush1.msra.mxu0 0.0
    %624 = vmatprep.subr.mxu0 0.0
    %625 = vmatpush1.msra.mxu0 0.0
    %626 = vmatprep.subr.mxu0 0.0
    %627 = vmatpush1.msra.mxu0 0.0
    %628 = vmatprep.subr.mxu0 0.0
    %629 = vmatpush1.msra.mxu0 0.0
    %630 = vmatprep.subr.mxu0 0.0
    %631 = vmatpush1.msra.mxu0 0.0
    %632 = vmatprep.subr.mxu0 0.0
    %633 = vmatpush1.msra.mxu0 0.0
    %634 = vmatprep.subr.mxu0 0.0
    %635 = vmatpush1.msra.mxu0 0.0
    %636 = vmatprep.subr.mxu0 0.0
    %637 = vmatpush1.msra.mxu0 0.0
    %638 = vmatprep.subr.mxu0 0.0
    %639 = vmatpush1.msra.mxu0 0.0
    %640 = vmatprep.subr.mxu0 0.0
    %641 = vmatpush1.msra.mxu0 0.0
    %642 = vmatprep.subr.mxu0 0.0
    %643 = vmatpush1.msra.mxu0 0.0
    %644 = vmatprep.subr.mxu0 0.0
    %645 = vmatpush1.msra.mxu0 0.0
    %646 = vmatprep.subr.mxu0 0.0
    %647 = vmatpush1.msra.mxu0 0.0
    %648 = vmatprep.subr.mxu0 0.0
    %649 = vmatpush1.msra.mxu0 0.0
    %650 = vmatprep.subr.mxu0 0.0
    %651 = vmatpush1.msra.mxu0 0.0
    %652 = vmatprep.subr.mxu0 0.0
    %653 = vmatpush1.msra.mxu0 0.0
    %654 = vmatprep.subr.mxu0 0.0
    %655 = vmatpush1.msra.mxu0 0.0
    %656 = vmatprep.subr.mxu0 0.0
    %657 = vmatpush1.msra.mxu0 0.0
    %658 = vmatprep.subr.mxu0 0.0
    %659 = vmatpush1.msra.mxu0 0.0
    %660 = vmatprep.subr.mxu0 0.0
    %661 = vmatpush1.msra.mxu0 0.0
    %662 = vmatprep.subr.mxu0 0.0
    %663 = vmatpush1.msra.mxu0 0.0
    %664 = vmatprep.subr.mxu0 0.0
    %665 = vmatpush1.msra.mxu0 0.0
    %666 = vmatprep.subr.mxu0 0.0
    %667 = vmatpush1.msra.mxu0 0.0
    %668 = vmatprep.subr.mxu0 0.0
    %669 = vmatpush1.msra.mxu0 0.0
    %670 = vmatprep.mubr.f32.mxu0 0.0
    %671 = vmatmul.mubr.f32.gmra.mrb[0].mxu0 %v319
    %v672 = vpop.f32.mrb[0].mxu0
    %v673 = vadd.f32 %v88, %v672
    %v674 = vpop.f32.mrb[0].mxu0
    %v675 = vadd.f32 %v88, %v674
    %676 = vdwg.mxu0
    %v679 = vcombine.low %v673, %v675
    %v681 = vunpack.c.l.s4 1983009808
    %v682 = vunpack.c.0.s8 %v681
    %v683 = vlaneseq
    %v684 = vshrl.u32 %v683, 7
    %v685 = vsub.s32 %v682, %v684
    %v686 = vrot.slane %v679, %v685
    %s688 = scalar_lea.vmem [#allocation2], 4
    %689 = vst [vmem:[%s688] sm:$0xf] %v686
    %s690 = scalar_lea.vmem %s0, 16
    %v691 = vld [vmem:[%s690] sm:$0xff]
    %v693 = vcombine.high %v691, %v691
    %v694 = vsel %vm106, %v691, 0
    %v696 = vsel %vm106, %v693, 0
    %698 = vmatprep.subr.mxu0 %v696
    %699 = vmatpush1.msra.mxu0 %v694
    %700 = vmatprep.subr.mxu0 0.0
    %701 = vmatpush1.msra.mxu0 0.0
    %702 = vmatprep.subr.mxu0 0.0
    %703 = vmatpush1.msra.mxu0 0.0
    %704 = vmatprep.subr.mxu0 0.0
    %705 = vmatpush1.msra.mxu0 0.0
    %706 = vmatprep.subr.mxu0 0.0
    %707 = vmatpush1.msra.mxu0 0.0
    %708 = vmatprep.subr.mxu0 0.0
    %709 = vmatpush1.msra.mxu0 0.0
    %710 = vmatprep.subr.mxu0 0.0
    %711 = vmatpush1.msra.mxu0 0.0
    %712 = vmatprep.subr.mxu0 0.0
    %713 = vmatpush1.msra.mxu0 0.0
    %714 = vmatprep.subr.mxu0 0.0
    %715 = vmatpush1.msra.mxu0 0.0
    %716 = vmatprep.subr.mxu0 0.0
    %717 = vmatpush1.msra.mxu0 0.0
    %718 = vmatprep.subr.mxu0 0.0
    %719 = vmatpush1.msra.mxu0 0.0
    %720 = vmatprep.subr.mxu0 0.0
    %721 = vmatpush1.msra.mxu0 0.0
    %722 = vmatprep.subr.mxu0 0.0
    %723 = vmatpush1.msra.mxu0 0.0
    %724 = vmatprep.subr.mxu0 0.0
    %725 = vmatpush1.msra.mxu0 0.0
    %726 = vmatprep.subr.mxu0 0.0
    %727 = vmatpush1.msra.mxu0 0.0
    %728 = vmatprep.subr.mxu0 0.0
    %729 = vmatpush1.msra.mxu0 0.0
    %730 = vmatprep.subr.mxu0 0.0
    %731 = vmatpush1.msra.mxu0 0.0
    %732 = vmatprep.subr.mxu0 0.0
    %733 = vmatpush1.msra.mxu0 0.0
    %734 = vmatprep.subr.mxu0 0.0
    %735 = vmatpush1.msra.mxu0 0.0
    %736 = vmatprep.subr.mxu0 0.0
    %737 = vmatpush1.msra.mxu0 0.0
    %738 = vmatprep.subr.mxu0 0.0
    %739 = vmatpush1.msra.mxu0 0.0
    %740 = vmatprep.subr.mxu0 0.0
    %741 = vmatpush1.msra.mxu0 0.0
    %742 = vmatprep.subr.mxu0 0.0
    %743 = vmatpush1.msra.mxu0 0.0
    %744 = vmatprep.subr.mxu0 0.0
    %745 = vmatpush1.msra.mxu0 0.0
    %746 = vmatprep.subr.mxu0 0.0
    %747 = vmatpush1.msra.mxu0 0.0
    %748 = vmatprep.subr.mxu0 0.0
    %749 = vmatpush1.msra.mxu0 0.0
    %750 = vmatprep.subr.mxu0 0.0
    %751 = vmatpush1.msra.mxu0 0.0
    %752 = vmatprep.subr.mxu0 0.0
    %753 = vmatpush1.msra.mxu0 0.0
    %754 = vmatprep.subr.mxu0 0.0
    %755 = vmatpush1.msra.mxu0 0.0
    %756 = vmatprep.subr.mxu0 0.0
    %757 = vmatpush1.msra.mxu0 0.0
    %758 = vmatprep.subr.mxu0 0.0
    %759 = vmatpush1.msra.mxu0 0.0
    %760 = vmatprep.subr.mxu0 0.0
    %761 = vmatpush1.msra.mxu0 0.0
    %762 = vmatprep.mubr.f32.mxu0 0.0
    %763 = vmatmul.mubr.f32.gmra.mrb[0].mxu0 %v95
    %v764 = vpop.f32.mrb[0].mxu0
    %v765 = vadd.f32 %v43, %v764
    %v766 = vpop.f32.mrb[0].mxu0
    %v767 = vadd.f32 %v43, %v766
    %768 = vmatprep.mubr.f32.mxu0 0.0
    %769 = vmatmul.mubr.f32.gmra.mrb[0].mxu0 %v98
    %v770 = vpop.f32.mrb[0].mxu0
    %v771 = vadd.f32 %v48, %v770
    %v772 = vpop.f32.mrb[0].mxu0
    %v773 = vadd.f32 %v48, %v772
    %774 = vmatprep.mubr.f32.mxu0 0.0
    %775 = vmatmul.mubr.f32.gmra.mrb[0].mxu0 %v101
    %v776 = vpop.f32.mrb[0].mxu0
    %v777 = vadd.f32 %v53, %v776
    %v778 = vpop.f32.mrb[0].mxu0
    %v779 = vadd.f32 %v53, %v778
    %780 = vmatprep.mubr.f32.mxu0 0.0
    %781 = vmatmul.mubr.f32.gmra.mrb[0].mxu0 %v104
    %v782 = vpop.f32.mrb[0].mxu0
    %v783 = vadd.f32 %v58, %v782
    %v784 = vpop.f32.mrb[0].mxu0
    %v785 = vadd.f32 %v58, %v784
    %786 = vdwg.mxu0
    %v787 = vmax.f32 %v765, 0.0
    %v788 = vmax.f32 %v767, 0.0
    %v789 = vmax.f32 %v771, 0.0
    %v790 = vmax.f32 %v773, 0.0
    %v791 = vmax.f32 %v777, 0.0
    %v792 = vmax.f32 %v779, 0.0
    %v793 = vmax.f32 %v783, 0.0
    %v794 = vmax.f32 %v785, 0.0
    %795 = vmatprep.subr.mxu0 %v788
    %796 = vmatpush1.msra.mxu0 %v787
    %797 = vmatprep.subr.mxu0 %v790
    %798 = vmatpush1.msra.mxu0 %v789
    %799 = vmatprep.subr.mxu0 %v792
    %800 = vmatpush1.msra.mxu0 %v791
    %801 = vmatprep.subr.mxu0 %v794
    %802 = vmatpush1.msra.mxu0 %v793
    %803 = vmatprep.subr.mxu0 0.0
    %804 = vmatpush1.msra.mxu0 0.0
    %805 = vmatprep.subr.mxu0 0.0
    %806 = vmatpush1.msra.mxu0 0.0
    %807 = vmatprep.subr.mxu0 0.0
    %808 = vmatpush1.msra.mxu0 0.0
    %809 = vmatprep.subr.mxu0 0.0
    %810 = vmatpush1.msra.mxu0 0.0
    %811 = vmatprep.subr.mxu0 0.0
    %812 = vmatpush1.msra.mxu0 0.0
    %813 = vmatprep.subr.mxu0 0.0
    %814 = vmatpush1.msra.mxu0 0.0
    %815 = vmatprep.subr.mxu0 0.0
    %816 = vmatpush1.msra.mxu0 0.0
    %817 = vmatprep.subr.mxu0 0.0
    %818 = vmatpush1.msra.mxu0 0.0
    %819 = vmatprep.subr.mxu0 0.0
    %820 = vmatpush1.msra.mxu0 0.0
    %821 = vmatprep.subr.mxu0 0.0
    %822 = vmatpush1.msra.mxu0 0.0
    %823 = vmatprep.subr.mxu0 0.0
    %824 = vmatpush1.msra.mxu0 0.0
    %825 = vmatprep.subr.mxu0 0.0
    %826 = vmatpush1.msra.mxu0 0.0
    %827 = vmatprep.subr.mxu0 0.0
    %828 = vmatpush1.msra.mxu0 0.0
    %829 = vmatprep.subr.mxu0 0.0
    %830 = vmatpush1.msra.mxu0 0.0
    %831 = vmatprep.subr.mxu0 0.0
    %832 = vmatpush1.msra.mxu0 0.0
    %833 = vmatprep.subr.mxu0 0.0
    %834 = vmatpush1.msra.mxu0 0.0
    %835 = vmatprep.subr.mxu0 0.0
    %836 = vmatpush1.msra.mxu0 0.0
    %837 = vmatprep.subr.mxu0 0.0
    %838 = vmatpush1.msra.mxu0 0.0
    %839 = vmatprep.subr.mxu0 0.0
    %840 = vmatpush1.msra.mxu0 0.0
    %841 = vmatprep.subr.mxu0 0.0
    %842 = vmatpush1.msra.mxu0 0.0
    %843 = vmatprep.subr.mxu0 0.0
    %844 = vmatpush1.msra.mxu0 0.0
    %845 = vmatprep.subr.mxu0 0.0
    %846 = vmatpush1.msra.mxu0 0.0
    %847 = vmatprep.subr.mxu0 0.0
    %848 = vmatpush1.msra.mxu0 0.0
    %849 = vmatprep.subr.mxu0 0.0
    %850 = vmatpush1.msra.mxu0 0.0
    %851 = vmatprep.subr.mxu0 0.0
    %852 = vmatpush1.msra.mxu0 0.0
    %853 = vmatprep.subr.mxu0 0.0
    %854 = vmatpush1.msra.mxu0 0.0
    %855 = vmatprep.subr.mxu0 0.0
    %856 = vmatpush1.msra.mxu0 0.0
    %857 = vmatprep.subr.mxu0 0.0
    %858 = vmatpush1.msra.mxu0 0.0
    %859 = vmatprep.mubr.f32.mxu0 0.0
    %860 = vmatmul.mubr.f32.gmra.mrb[0].mxu0 %v210
    %v861 = vpop.f32.mrb[0].mxu0
    %v862 = vadd.f32 %v67, %v861
    %v863 = vpop.f32.mrb[0].mxu0
    %v864 = vadd.f32 %v67, %v863
    %865 = vmatprep.mubr.f32.mxu0 0.0
    %866 = vmatmul.mubr.f32.gmra.mrb[0].mxu0 %v213
    %v867 = vpop.f32.mrb[0].mxu0
    %v868 = vadd.f32 %v72, %v867
    %v869 = vpop.f32.mrb[0].mxu0
    %v870 = vadd.f32 %v72, %v869
    %871 = vmatprep.mubr.f32.mxu0 0.0
    %872 = vmatmul.mubr.f32.gmra.mrb[0].mxu0 %v216
    %v873 = vpop.f32.mrb[0].mxu0
    %v874 = vadd.f32 %v77, %v873
    %v875 = vpop.f32.mrb[0].mxu0
    %v876 = vadd.f32 %v77, %v875
    %877 = vmatprep.mubr.f32.mxu0 0.0
    %878 = vmatmul.mubr.f32.gmra.mrb[0].mxu0 %v219
    %v879 = vpop.f32.mrb[0].mxu0
    %v880 = vadd.f32 %v82, %v879
    %v881 = vpop.f32.mrb[0].mxu0
    %v882 = vadd.f32 %v82, %v881
    %883 = vdwg.mxu0
    %v884 = vmax.f32 %v862, 0.0
    %v885 = vmax.f32 %v864, 0.0
    %v886 = vmax.f32 %v868, 0.0
    %v887 = vmax.f32 %v870, 0.0
    %v888 = vmax.f32 %v874, 0.0
    %v889 = vmax.f32 %v876, 0.0
    %v890 = vmax.f32 %v880, 0.0
    %v891 = vmax.f32 %v882, 0.0
    %892 = vmatprep.subr.mxu0 %v885
    %893 = vmatpush1.msra.mxu0 %v884
    %894 = vmatprep.subr.mxu0 %v887
    %895 = vmatpush1.msra.mxu0 %v886
    %896 = vmatprep.subr.mxu0 %v889
    %897 = vmatpush1.msra.mxu0 %v888
    %898 = vmatprep.subr.mxu0 %v891
    %899 = vmatpush1.msra.mxu0 %v890
    %900 = vmatprep.subr.mxu0 0.0
    %901 = vmatpush1.msra.mxu0 0.0
    %902 = vmatprep.subr.mxu0 0.0
    %903 = vmatpush1.msra.mxu0 0.0
    %904 = vmatprep.subr.mxu0 0.0
    %905 = vmatpush1.msra.mxu0 0.0
    %906 = vmatprep.subr.mxu0 0.0
    %907 = vmatpush1.msra.mxu0 0.0
    %908 = vmatprep.subr.mxu0 0.0
    %909 = vmatpush1.msra.mxu0 0.0
    %910 = vmatprep.subr.mxu0 0.0
    %911 = vmatpush1.msra.mxu0 0.0
    %912 = vmatprep.subr.mxu0 0.0
    %913 = vmatpush1.msra.mxu0 0.0
    %914 = vmatprep.subr.mxu0 0.0
    %915 = vmatpush1.msra.mxu0 0.0
    %916 = vmatprep.subr.mxu0 0.0
    %917 = vmatpush1.msra.mxu0 0.0
    %918 = vmatprep.subr.mxu0 0.0
    %919 = vmatpush1.msra.mxu0 0.0
    %920 = vmatprep.subr.mxu0 0.0
    %921 = vmatpush1.msra.mxu0 0.0
    %922 = vmatprep.subr.mxu0 0.0
    %923 = vmatpush1.msra.mxu0 0.0
    %924 = vmatprep.subr.mxu0 0.0
    %925 = vmatpush1.msra.mxu0 0.0
    %926 = vmatprep.subr.mxu0 0.0
    %927 = vmatpush1.msra.mxu0 0.0
    %928 = vmatprep.subr.mxu0 0.0
    %929 = vmatpush1.msra.mxu0 0.0
    %930 = vmatprep.subr.mxu0 0.0
    %931 = vmatpush1.msra.mxu0 0.0
    %932 = vmatprep.subr.mxu0 0.0
    %933 = vmatpush1.msra.mxu0 0.0
    %934 = vmatprep.subr.mxu0 0.0
    %935 = vmatpush1.msra.mxu0 0.0
    %936 = vmatprep.subr.mxu0 0.0
    %937 = vmatpush1.msra.mxu0 0.0
    %938 = vmatprep.subr.mxu0 0.0
    %939 = vmatpush1.msra.mxu0 0.0
    %940 = vmatprep.subr.mxu0 0.0
    %941 = vmatpush1.msra.mxu0 0.0
    %942 = vmatprep.subr.mxu0 0.0
    %943 = vmatpush1.msra.mxu0 0.0
    %944 = vmatprep.subr.mxu0 0.0
    %945 = vmatpush1.msra.mxu0 0.0
    %946 = vmatprep.subr.mxu0 0.0
    %947 = vmatpush1.msra.mxu0 0.0
    %948 = vmatprep.subr.mxu0 0.0
    %949 = vmatpush1.msra.mxu0 0.0
    %950 = vmatprep.subr.mxu0 0.0
    %951 = vmatpush1.msra.mxu0 0.0
    %952 = vmatprep.subr.mxu0 0.0
    %953 = vmatpush1.msra.mxu0 0.0
    %954 = vmatprep.subr.mxu0 0.0
    %955 = vmatpush1.msra.mxu0 0.0
    %956 = vmatprep.mubr.f32.mxu0 0.0
    %957 = vmatmul.mubr.f32.gmra.mrb[0].mxu0 %v319
    %v958 = vpop.f32.mrb[0].mxu0
    %v959 = vadd.f32 %v88, %v958
    %v960 = vpop.f32.mrb[0].mxu0
    %v961 = vadd.f32 %v88, %v960
    %962 = vdwg.mxu0
    %v965 = vcombine.low %v959, %v961
    %v967 = vunpack.c.l.s4 1983009808
    %v968 = vunpack.c.0.s8 %v967
    %v969 = vlaneseq
    %v970 = vshrl.u32 %v969, 7
    %v971 = vsub.s32 %v968, %v970
    %v972 = vrot.slane %v965, %v971
    %s974 = scalar_lea.vmem [#allocation2], 8
    %975 = vst [vmem:[%s974] sm:$0xf] %v972
    %s976 = scalar_lea.vmem %s0, 24
    %v977 = vld [vmem:[%s976] sm:$0xff]
    %v979 = vcombine.high %v977, %v977
    %v980 = vsel %vm106, %v977, 0
    %v982 = vsel %vm106, %v979, 0
    %984 = vmatprep.subr.mxu0 %v982
    %985 = vmatpush1.msra.mxu0 %v980
    %986 = vmatprep.subr.mxu0 0.0
    %987 = vmatpush1.msra.mxu0 0.0
    %988 = vmatprep.subr.mxu0 0.0
    %989 = vmatpush1.msra.mxu0 0.0
    %990 = vmatprep.subr.mxu0 0.0
    %991 = vmatpush1.msra.mxu0 0.0
    %992 = vmatprep.subr.mxu0 0.0
    %993 = vmatpush1.msra.mxu0 0.0
    %994 = vmatprep.subr.mxu0 0.0
    %995 = vmatpush1.msra.mxu0 0.0
    %996 = vmatprep.subr.mxu0 0.0
    %997 = vmatpush1.msra.mxu0 0.0
    %998 = vmatprep.subr.mxu0 0.0
    %999 = vmatpush1.msra.mxu0 0.0
    %1000 = vmatprep.subr.mxu0 0.0
    %1001 = vmatpush1.msra.mxu0 0.0
    %1002 = vmatprep.subr.mxu0 0.0
    %1003 = vmatpush1.msra.mxu0 0.0
    %1004 = vmatprep.subr.mxu0 0.0
    %1005 = vmatpush1.msra.mxu0 0.0
    %1006 = vmatprep.subr.mxu0 0.0
    %1007 = vmatpush1.msra.mxu0 0.0
    %1008 = vmatprep.subr.mxu0 0.0
    %1009 = vmatpush1.msra.mxu0 0.0
    %1010 = vmatprep.subr.mxu0 0.0
    %1011 = vmatpush1.msra.mxu0 0.0
    %1012 = vmatprep.subr.mxu0 0.0
    %1013 = vmatpush1.msra.mxu0 0.0
    %1014 = vmatprep.subr.mxu0 0.0
    %1015 = vmatpush1.msra.mxu0 0.0
    %1016 = vmatprep.subr.mxu0 0.0
    %1017 = vmatpush1.msra.mxu0 0.0
    %1018 = vmatprep.subr.mxu0 0.0
    %1019 = vmatpush1.msra.mxu0 0.0
    %1020 = vmatprep.subr.mxu0 0.0
    %1021 = vmatpush1.msra.mxu0 0.0
    %1022 = vmatprep.subr.mxu0 0.0
    %1023 = vmatpush1.msra.mxu0 0.0
    %1024 = vmatprep.subr.mxu0 0.0
    %1025 = vmatpush1.msra.mxu0 0.0
    %1026 = vmatprep.subr.mxu0 0.0
    %1027 = vmatpush1.msra.mxu0 0.0
    %1028 = vmatprep.subr.mxu0 0.0
    %1029 = vmatpush1.msra.mxu0 0.0
    %1030 = vmatprep.subr.mxu0 0.0
    %1031 = vmatpush1.msra.mxu0 0.0
    %1032 = vmatprep.subr.mxu0 0.0
    %1033 = vmatpush1.msra.mxu0 0.0
    %1034 = vmatprep.subr.mxu0 0.0
    %1035 = vmatpush1.msra.mxu0 0.0
    %1036 = vmatprep.subr.mxu0 0.0
    %1037 = vmatpush1.msra.mxu0 0.0
    %1038 = vmatprep.subr.mxu0 0.0
    %1039 = vmatpush1.msra.mxu0 0.0
    %1040 = vmatprep.subr.mxu0 0.0
    %1041 = vmatpush1.msra.mxu0 0.0
    %1042 = vmatprep.subr.mxu0 0.0
    %1043 = vmatpush1.msra.mxu0 0.0
    %1044 = vmatprep.subr.mxu0 0.0
    %1045 = vmatpush1.msra.mxu0 0.0
    %1046 = vmatprep.subr.mxu0 0.0
    %1047 = vmatpush1.msra.mxu0 0.0
    %1048 = vmatprep.mubr.f32.mxu0 0.0
    %1049 = vmatmul.mubr.f32.gmra.mrb[0].mxu0 %v95
    %v1050 = vpop.f32.mrb[0].mxu0
    %v1051 = vadd.f32 %v43, %v1050
    %v1052 = vpop.f32.mrb[0].mxu0
    %v1053 = vadd.f32 %v43, %v1052
    %1054 = vmatprep.mubr.f32.mxu0 0.0
    %1055 = vmatmul.mubr.f32.gmra.mrb[0].mxu0 %v98
    %v1056 = vpop.f32.mrb[0].mxu0
    %v1057 = vadd.f32 %v48, %v1056
    %v1058 = vpop.f32.mrb[0].mxu0
    %v1059 = vadd.f32 %v48, %v1058
    %1060 = vmatprep.mubr.f32.mxu0 0.0
    %1061 = vmatmul.mubr.f32.gmra.mrb[0].mxu0 %v101
    %v1062 = vpop.f32.mrb[0].mxu0
    %v1063 = vadd.f32 %v53, %v1062
    %v1064 = vpop.f32.mrb[0].mxu0
    %v1065 = vadd.f32 %v53, %v1064
    %1066 = vmatprep.mubr.f32.mxu0 0.0
    %1067 = vmatmul.mubr.f32.gmra.mrb[0].mxu0 %v104
    %v1068 = vpop.f32.mrb[0].mxu0
    %v1069 = vadd.f32 %v58, %v1068
    %v1070 = vpop.f32.mrb[0].mxu0
    %v1071 = vadd.f32 %v58, %v1070
    %1072 = vdwg.mxu0
    %v1073 = vmax.f32 %v1051, 0.0
    %v1074 = vmax.f32 %v1053, 0.0
    %v1075 = vmax.f32 %v1057, 0.0
    %v1076 = vmax.f32 %v1059, 0.0
    %v1077 = vmax.f32 %v1063, 0.0
    %v1078 = vmax.f32 %v1065, 0.0
    %v1079 = vmax.f32 %v1069, 0.0
    %v1080 = vmax.f32 %v1071, 0.0
    %1081 = vmatprep.subr.mxu0 %v1074
    %1082 = vmatpush1.msra.mxu0 %v1073
    %1083 = vmatprep.subr.mxu0 %v1076
    %1084 = vmatpush1.msra.mxu0 %v1075
    %1085 = vmatprep.subr.mxu0 %v1078
    %1086 = vmatpush1.msra.mxu0 %v1077
    %1087 = vmatprep.subr.mxu0 %v1080
    %1088 = vmatpush1.msra.mxu0 %v1079
    %1089 = vmatprep.subr.mxu0 0.0
    %1090 = vmatpush1.msra.mxu0 0.0
    %1091 = vmatprep.subr.mxu0 0.0
    %1092 = vmatpush1.msra.mxu0 0.0
    %1093 = vmatprep.subr.mxu0 0.0
    %1094 = vmatpush1.msra.mxu0 0.0
    %1095 = vmatprep.subr.mxu0 0.0
    %1096 = vmatpush1.msra.mxu0 0.0
    %1097 = vmatprep.subr.mxu0 0.0
    %1098 = vmatpush1.msra.mxu0 0.0
    %1099 = vmatprep.subr.mxu0 0.0
    %1100 = vmatpush1.msra.mxu0 0.0
    %1101 = vmatprep.subr.mxu0 0.0
    %1102 = vmatpush1.msra.mxu0 0.0
    %1103 = vmatprep.subr.mxu0 0.0
    %1104 = vmatpush1.msra.mxu0 0.0
    %1105 = vmatprep.subr.mxu0 0.0
    %1106 = vmatpush1.msra.mxu0 0.0
    %1107 = vmatprep.subr.mxu0 0.0
    %1108 = vmatpush1.msra.mxu0 0.0
    %1109 = vmatprep.subr.mxu0 0.0
    %1110 = vmatpush1.msra.mxu0 0.0
    %1111 = vmatprep.subr.mxu0 0.0
    %1112 = vmatpush1.msra.mxu0 0.0
    %1113 = vmatprep.subr.mxu0 0.0
    %1114 = vmatpush1.msra.mxu0 0.0
    %1115 = vmatprep.subr.mxu0 0.0
    %1116 = vmatpush1.msra.mxu0 0.0
    %1117 = vmatprep.subr.mxu0 0.0
    %1118 = vmatpush1.msra.mxu0 0.0
    %1119 = vmatprep.subr.mxu0 0.0
    %1120 = vmatpush1.msra.mxu0 0.0
    %1121 = vmatprep.subr.mxu0 0.0
    %1122 = vmatpush1.msra.mxu0 0.0
    %1123 = vmatprep.subr.mxu0 0.0
    %1124 = vmatpush1.msra.mxu0 0.0
    %1125 = vmatprep.subr.mxu0 0.0
    %1126 = vmatpush1.msra.mxu0 0.0
    %1127 = vmatprep.subr.mxu0 0.0
    %1128 = vmatpush1.msra.mxu0 0.0
    %1129 = vmatprep.subr.mxu0 0.0
    %1130 = vmatpush1.msra.mxu0 0.0
    %1131 = vmatprep.subr.mxu0 0.0
    %1132 = vmatpush1.msra.mxu0 0.0
    %1133 = vmatprep.subr.mxu0 0.0
    %1134 = vmatpush1.msra.mxu0 0.0
    %1135 = vmatprep.subr.mxu0 0.0
    %1136 = vmatpush1.msra.mxu0 0.0
    %1137 = vmatprep.subr.mxu0 0.0
    %1138 = vmatpush1.msra.mxu0 0.0
    %1139 = vmatprep.subr.mxu0 0.0
    %1140 = vmatpush1.msra.mxu0 0.0
    %1141 = vmatprep.subr.mxu0 0.0
    %1142 = vmatpush1.msra.mxu0 0.0
    %1143 = vmatprep.subr.mxu0 0.0
    %1144 = vmatpush1.msra.mxu0 0.0
    %1145 = vmatprep.mubr.f32.mxu0 0.0
    %1146 = vmatmul.mubr.f32.gmra.mrb[0].mxu0 %v210
    %v1147 = vpop.f32.mrb[0].mxu0
    %v1148 = vadd.f32 %v67, %v1147
    %v1149 = vpop.f32.mrb[0].mxu0
    %v1150 = vadd.f32 %v67, %v1149
    %1151 = vmatprep.mubr.f32.mxu0 0.0
    %1152 = vmatmul.mubr.f32.gmra.mrb[0].mxu0 %v213
    %v1153 = vpop.f32.mrb[0].mxu0
    %v1154 = vadd.f32 %v72, %v1153
    %v1155 = vpop.f32.mrb[0].mxu0
    %v1156 = vadd.f32 %v72, %v1155
    %1157 = vmatprep.mubr.f32.mxu0 0.0
    %1158 = vmatmul.mubr.f32.gmra.mrb[0].mxu0 %v216
    %v1159 = vpop.f32.mrb[0].mxu0
    %v1160 = vadd.f32 %v77, %v1159
    %v1161 = vpop.f32.mrb[0].mxu0
    %v1162 = vadd.f32 %v77, %v1161
    %1163 = vmatprep.mubr.f32.mxu0 0.0
    %1164 = vmatmul.mubr.f32.gmra.mrb[0].mxu0 %v219
    %v1165 = vpop.f32.mrb[0].mxu0
    %v1166 = vadd.f32 %v82, %v1165
    %v1167 = vpop.f32.mrb[0].mxu0
    %v1168 = vadd.f32 %v82, %v1167
    %1169 = vdwg.mxu0
    %v1170 = vmax.f32 %v1148, 0.0
    %v1171 = vmax.f32 %v1150, 0.0
    %v1172 = vmax.f32 %v1154, 0.0
    %v1173 = vmax.f32 %v1156, 0.0
    %v1174 = vmax.f32 %v1160, 0.0
    %v1175 = vmax.f32 %v1162, 0.0
    %v1176 = vmax.f32 %v1166, 0.0
    %v1177 = vmax.f32 %v1168, 0.0
    %1178 = vmatprep.subr.mxu0 %v1171
    %1179 = vmatpush1.msra.mxu0 %v1170
    %1180 = vmatprep.subr.mxu0 %v1173
    %1181 = vmatpush1.msra.mxu0 %v1172
    %1182 = vmatprep.subr.mxu0 %v1175
    %1183 = vmatpush1.msra.mxu0 %v1174
    %1184 = vmatprep.subr.mxu0 %v1177
    %1185 = vmatpush1.msra.mxu0 %v1176
    %1186 = vmatprep.subr.mxu0 0.0
    %1187 = vmatpush1.msra.mxu0 0.0
    %1188 = vmatprep.subr.mxu0 0.0
    %1189 = vmatpush1.msra.mxu0 0.0
    %1190 = vmatprep.subr.mxu0 0.0
    %1191 = vmatpush1.msra.mxu0 0.0
    %1192 = vmatprep.subr.mxu0 0.0
    %1193 = vmatpush1.msra.mxu0 0.0
    %1194 = vmatprep.subr.mxu0 0.0
    %1195 = vmatpush1.msra.mxu0 0.0
    %1196 = vmatprep.subr.mxu0 0.0
    %1197 = vmatpush1.msra.mxu0 0.0
    %1198 = vmatprep.subr.mxu0 0.0
    %1199 = vmatpush1.msra.mxu0 0.0
    %1200 = vmatprep.subr.mxu0 0.0
    %1201 = vmatpush1.msra.mxu0 0.0
    %1202 = vmatprep.subr.mxu0 0.0
    %1203 = vmatpush1.msra.mxu0 0.0
    %1204 = vmatprep.subr.mxu0 0.0
    %1205 = vmatpush1.msra.mxu0 0.0
    %1206 = vmatprep.subr.mxu0 0.0
    %1207 = vmatpush1.msra.mxu0 0.0
    %1208 = vmatprep.subr.mxu0 0.0
    %1209 = vmatpush1.msra.mxu0 0.0
    %1210 = vmatprep.subr.mxu0 0.0
    %1211 = vmatpush1.msra.mxu0 0.0
    %1212 = vmatprep.subr.mxu0 0.0
    %1213 = vmatpush1.msra.mxu0 0.0
    %1214 = vmatprep.subr.mxu0 0.0
    %1215 = vmatpush1.msra.mxu0 0.0
    %1216 = vmatprep.subr.mxu0 0.0
    %1217 = vmatpush1.msra.mxu0 0.0
    %1218 = vmatprep.subr.mxu0 0.0
    %1219 = vmatpush1.msra.mxu0 0.0
    %1220 = vmatprep.subr.mxu0 0.0
    %1221 = vmatpush1.msra.mxu0 0.0
    %1222 = vmatprep.subr.mxu0 0.0
    %1223 = vmatpush1.msra.mxu0 0.0
    %1224 = vmatprep.subr.mxu0 0.0
    %1225 = vmatpush1.msra.mxu0 0.0
    %1226 = vmatprep.subr.mxu0 0.0
    %1227 = vmatpush1.msra.mxu0 0.0
    %1228 = vmatprep.subr.mxu0 0.0
    %1229 = vmatpush1.msra.mxu0 0.0
    %1230 = vmatprep.subr.mxu0 0.0
    %1231 = vmatpush1.msra.mxu0 0.0
    %1232 = vmatprep.subr.mxu0 0.0
    %1233 = vmatpush1.msra.mxu0 0.0
    %1234 = vmatprep.subr.mxu0 0.0
    %1235 = vmatpush1.msra.mxu0 0.0
    %1236 = vmatprep.subr.mxu0 0.0
    %1237 = vmatpush1.msra.mxu0 0.0
    %1238 = vmatprep.subr.mxu0 0.0
    %1239 = vmatpush1.msra.mxu0 0.0
    %1240 = vmatprep.subr.mxu0 0.0
    %1241 = vmatpush1.msra.mxu0 0.0
    %1242 = vmatprep.mubr.f32.mxu0 0.0
    %1243 = vmatmul.mubr.f32.gmra.mrb[0].mxu0 %v319
    %v1244 = vpop.f32.mrb[0].mxu0
    %v1245 = vadd.f32 %v88, %v1244
    %v1246 = vpop.f32.mrb[0].mxu0
    %v1247 = vadd.f32 %v88, %v1246
    %1248 = vdwg.mxu0
    %v1251 = vcombine.low %v1245, %v1247
    %v1253 = vunpack.c.l.s4 1983009808
    %v1254 = vunpack.c.0.s8 %v1253
    %v1255 = vlaneseq
    %v1256 = vshrl.u32 %v1255, 7
    %v1257 = vsub.s32 %v1254, %v1256
    %v1258 = vrot.slane %v1251, %v1257
    %s1260 = scalar_lea.vmem [#allocation2], 12
    %1261 = vst [vmem:[%s1260] sm:$0xf] %v1258
    // Predicated region
    $region30: #{controlnet_forward.1} parent=1 // pred_check
      _
    $region31: #{controlnet_forward.1} parent=1 // pred_check_branch
      %1263 = sbr.rel (0) target = $region33
    $region32: #{controlnet_forward.1} parent=1 // pred_region
      %s1265 = ssub.s32 256, 256
      %1266 = vsyncadd [#allocation3], %s1265
      %s1268 = sshll.u32 [#allocation2], 4
      %s1269 = int_to_ptr.vmem [resolvable:$true] %s1268
      %1271 = dma.vmem_to_hbm [thread:$0]  %s1269, 256, %s7, [#allocation3]
    $region33: #{controlnet_forward.1} parent=1 // pred_fallthru
      _
    // Predicated region
    $region34: #{controlnet_forward.1} parent=1 // pred_check
      _
    $region35: #{controlnet_forward.1} parent=1 // pred_check_branch
      %1273 = sbr.rel (0) target = $region37
    $region36: #{controlnet_forward.1} parent=1 // pred_region
      %1274 = dma.done [#allocation3], 256
    $region37: #{controlnet_forward.1} parent=1 // pred_fallthru
      _
    %1275 = vsyncpa [#allocation3], 1

</llo_original>
